<compile_context>
chip_gen: v7x
topology: tpu7x:2x2x1
jax: 0.10.0
libtpu: 0.0.40
codegen_flags: <defaults>
</compile_context>

<pallas_src>
import functools
import math

import jax
import jax.numpy as jnp
from jax.experimental import pallas as pl
from jax.experimental.pallas import tpu as pltpu


# ----------------------------- global config --------------------------------

_MXU_DTYPE = jnp.bfloat16                 # MXU inputs bf16, f32 accumulation
_LN_EPS = 1e-5
_NEG_INF = -1e9
_VMEM_LIMIT = 48 * 1024 * 1024            # explicit scoped-VMEM limit (v7x-safe)


def _cparams(*sems):
    return pltpu.CompilerParams(dimension_semantics=tuple(sems),
                                vmem_limit_bytes=_VMEM_LIMIT)


def _const_spec(shape):
    # Block whose index never changes across the grid (weights / biases / LN
    # params): single-buffer it so Pallas does not waste VMEM double-buffering.
    nd = len(shape)
    return pl.BlockSpec(shape, lambda *_: (0,) * nd,
                        pipeline_mode=pl.Buffered(1))


def _pick_block(n, candidates):
    for c in candidates:
        if n % c == 0:
            return c
    # TODO(synk): cdiv grid + masked remainder tile for sizes with no aligned divisor.
    return n


def _pick_row_block(m):
    # flattened-row tiles: prefer 256-512, always a multiple of 8 (or full dim)
    return _pick_block(m, (512, 256, 128, 64, 32, 16, 8))


def _pick_q_block(s):
    # query-sequence tiles (sublane axis): multiple of 8 (or full dim)
    return _pick_block(s, (256, 128, 64, 32, 16, 8))


def _pick_k_block(s):
    # key-sequence tiles end up on a lane axis (validity row vector): must be a
    # multiple of 128 or the full dim
    return _pick_block(s, (512, 256, 128))


def _pick_col_block(v):
    # vocab tiles (lane axis): multiple of 128 or full dim
    return _pick_block(v, (2048, 1024, 512, 256, 128))


# ----------------------------- Pallas kernels -------------------------------


def _headwise_proj_kernel(x_ref, w_ref, b_ref, o_ref):
    # x: (1, S, D) f32 ; w: (1, D, dh) bf16 ; b: (1, 1, dh) f32
    # o: (1, 1, S, dh) bf16  — one (batch, head-column-group) tile per step.
    y = jnp.dot(x_ref[0].astype(_MXU_DTYPE), w_ref[0],
                preferred_element_type=jnp.float32) + b_ref[0]
    o_ref[0, 0] = y.astype(o_ref.dtype)


def _make_attn_kernel(*, causal, masked, scale, tq, tk):
    """Flash-style attention over one (batch, head, q-tile); Sk tiled on grid."""

    def kernel(*refs):
        if masked:
            (q_ref, k_ref, v_ref, qv_ref, kvv_ref, o_ref,
             m_sc, l_sc, acc_sc) = refs
        else:
            q_ref, k_ref, v_ref, o_ref, m_sc, l_sc, acc_sc = refs

        kj = pl.program_id(3)

        @pl.when(kj == 0)
        def _():
            m_sc[...] = jnp.full(m_sc.shape, -jnp.inf, m_sc.dtype)
            l_sc[...] = jnp.zeros(l_sc.shape, l_sc.dtype)
            acc_sc[...] = jnp.zeros(acc_sc.shape, acc_sc.dtype)

        q = q_ref[0, 0]                       # (tq, dh) bf16
        k = k_ref[0, 0]                       # (tk, dh) bf16
        v = v_ref[0, 0]                       # (tk, dh) bf16

        # q @ k^T without an explicit transpose (contract last dims)
        s = jax.lax.dot_general(q, k, (((1,), (1,)), ((), ())),
                                preferred_element_type=jnp.float32) * scale

        if masked or causal:
            allowed = None
            if masked:
                # pad mask built in-kernel from tiny validity vectors
                allowed = (qv_ref[0] * kvv_ref[0]) > 0.5          # (tq, tk)
            if causal:
                qpos = pl.program_id(2) * tq + jax.lax.broadcasted_iota(
                    jnp.int32, (tq, tk), 0)
                kpos = kj * tk + jax.lax.broadcasted_iota(
                    jnp.int32, (tq, tk), 1)
                cmask = qpos >= kpos
                allowed = cmask if allowed is None else (allowed & cmask)
            s = jnp.where(allowed, s, _NEG_INF)

        m_prev = m_sc[...]
        m_new = jnp.maximum(m_prev, jnp.max(s, axis=-1, keepdims=True))
        alpha = jnp.exp(m_prev - m_new)
        p = jnp.exp(s - m_new)
        l_sc[...] = alpha * l_sc[...] + jnp.sum(p, axis=-1, keepdims=True)
        acc_sc[...] = alpha * acc_sc[...] + jnp.dot(
            p.astype(v.dtype), v, preferred_element_type=jnp.float32)
        m_sc[...] = m_new

        @pl.when(kj == pl.num_programs(3) - 1)
        def _():
            # exact normalize (once per tile) for better parity with reference
            o_ref[0, 0] = (acc_sc[...] / l_sc[...]).astype(o_ref.dtype)

    return kernel


def _merge_proj_add_ln_kernel(a_ref, wo_ref, bo_ref, r_ref, g_ref, beta_ref,
                              o_ref, *, num_heads, eps):
    # out = LayerNorm(residual + concat_heads(a) @ Wo + bo)
    # a: (1, H, tq, dh) bf16 ; wo: (H, dh, D) bf16 ; others f32.
    y = r_ref[0] + bo_ref[...]
    for h in range(num_heads):       # major-dim indexing only (no lane slicing)
        y = y + jnp.dot(a_ref[0, h], wo_ref[h],
                        preferred_element_type=jnp.float32)
    mean = jnp.mean(y, axis=-1, keepdims=True)
    var = jnp.mean((y - mean) ** 2, axis=-1, keepdims=True)
    o_ref[0] = (y - mean) * jax.lax.rsqrt(var + eps) * g_ref[...] + beta_ref[...]


def _ffn_add_ln_kernel(x_ref, w1_ref, b1_ref, w2_ref, b2_ref, g_ref, beta_ref,
                       o_ref, *, eps):
    # out = LayerNorm(x + relu(x @ w1 + b1) @ w2 + b2)
    x = x_ref[...]
    h = jnp.maximum(
        jnp.dot(x.astype(_MXU_DTYPE), w1_ref[...],
                preferred_element_type=jnp.float32) + b1_ref[...], 0.0)
    y = x + jnp.dot(h.astype(_MXU_DTYPE), w2_ref[...],
                    preferred_element_type=jnp.float32) + b2_ref[...]
    mean = jnp.mean(y, axis=-1, keepdims=True)
    var = jnp.mean((y - mean) ** 2, axis=-1, keepdims=True)
    o_ref[...] = (y - mean) * jax.lax.rsqrt(var + eps) * g_ref[...] + beta_ref[...]


def _gen_logits_lse_kernel(x_ref, w_ref, b_ref, logits_ref, lse_ref, m_sc, l_sc):
    # Vocab-tiled generator, pass 1: logits tiles + online LSE over V axis.
    j = pl.program_id(1)

    @pl.when(j == 0)
    def _():
        m_sc[...] = jnp.full(m_sc.shape, -jnp.inf, m_sc.dtype)
        l_sc[...] = jnp.zeros(l_sc.shape, l_sc.dtype)

    logits = jnp.dot(x_ref[...].astype(_MXU_DTYPE), w_ref[...],
                     preferred_element_type=jnp.float32) + b_ref[...]
    logits_ref[...] = logits

    m_prev = m_sc[...]
    m_new = jnp.maximum(m_prev, jnp.max(logits, axis=-1, keepdims=True))
    l_sc[...] = l_sc[...] * jnp.exp(m_prev - m_new) + jnp.sum(
        jnp.exp(logits - m_new), axis=-1, keepdims=True)
    m_sc[...] = m_new

    @pl.when(j == pl.num_programs(1) - 1)
    def _():
        lse_ref[...] = m_sc[...] + jnp.log(l_sc[...])


def _logsoftmax_finalize_kernel(logits_ref, lse_ref, o_ref):
    # Vocab-tiled generator, pass 2: out = logits - lse
    o_ref[...] = logits_ref[...] - lse_ref[...]


# ----------------------------- kernel wrappers ------------------------------


def headwise_projection(x, w, b):
    """x: (B, S, D) f32 ; w: (G, D, dh) bf16 ; b: (G, 1, dh) f32 -> (B, G, S, dh) bf16."""
    B, S, D = x.shape
    G, _, dh = w.shape
    return pl.pallas_call(
        _headwise_proj_kernel,
        out_shape=jax.ShapeDtypeStruct((B, G, S, dh), _MXU_DTYPE),
        grid=(B, G),
        in_specs=[
            pl.BlockSpec((1, S, D), lambda b, j: (b, 0, 0)),
            pl.BlockSpec((1, D, dh), lambda b, j: (j, 0, 0)),
            pl.BlockSpec((1, 1, dh), lambda b, j: (j, 0, 0)),
        ],
        out_specs=pl.BlockSpec((1, 1, S, dh), lambda b, j: (b, j, 0, 0)),
        compiler_params=_cparams("parallel", "parallel"),
    )(x, w, b)


def attention(q_arr, k_arr, v_arr, *, num_heads, k_base, v_base, causal,
              q_valid=None, kv_valid=None):
    """Flash-style MHA over head-major activations.

    q_arr: (B, Gq, Sq, dh) bf16 — query heads live at indices [0, H).
    k_arr/v_arr: (B, Gk, Sk, dh) bf16 — K heads at [k_base, k_base+H),
                                        V heads at [v_base, v_base+H).
    q_valid: (B, Sq, 1) f32 / kv_valid: (B, 1, Sk) f32 (None -> no pad mask).
    """
    B, _, Sq, dh = q_arr.shape
    Sk = k_arr.shape[2]
    scale = 1.0 / math.sqrt(dh)
    tq = _pick_q_block(Sq)
    tk = _pick_k_block(Sk)
    masked = q_valid is not None

    in_specs = [
        pl.BlockSpec((1, 1, tq, dh), lambda b, h, qi, kj: (b, h, qi, 0)),
        pl.BlockSpec((1, 1, tk, dh), lambda b, h, qi, kj: (b, h + k_base, kj, 0)),
        pl.BlockSpec((1, 1, tk, dh), lambda b, h, qi, kj: (b, h + v_base, kj, 0)),
    ]
    args = [q_arr, k_arr, v_arr]
    if masked:
        in_specs += [
            pl.BlockSpec((1, tq, 1), lambda b, h, qi, kj: (b, qi, 0)),
            pl.BlockSpec((1, 1, tk), lambda b, h, qi, kj: (b, 0, kj)),
        ]
        args += [q_valid, kv_valid]

    return pl.pallas_call(
        _make_attn_kernel(causal=causal, masked=masked, scale=scale,
                          tq=tq, tk=tk),
        out_shape=jax.ShapeDtypeStruct((B, num_heads, Sq, dh), _MXU_DTYPE),
        grid=(B, num_heads, Sq // tq, Sk // tk),
        in_specs=in_specs,
        out_specs=pl.BlockSpec((1, 1, tq, dh), lambda b, h, qi, kj: (b, h, qi, 0)),
        scratch_shapes=[pltpu.VMEM((tq, 1), jnp.float32),
                        pltpu.VMEM((tq, 1), jnp.float32),
                        pltpu.VMEM((tq, dh), jnp.float32)],
        compiler_params=_cparams("parallel", "parallel", "parallel", "arbitrary"),
    )(*args)


def merge_proj_add_layernorm(a, wo, bo, residual, g, beta, eps=_LN_EPS):
    """LayerNorm(residual + concat_heads(a) @ Wo + bo).  a: (B, H, S, dh) bf16."""
    B, H, S, dh = a.shape
    D = residual.shape[-1]
    tq = _pick_q_block(S)
    return pl.pallas_call(
        functools.partial(_merge_proj_add_ln_kernel, num_heads=H, eps=eps),
        out_shape=jax.ShapeDtypeStruct((B, S, D), jnp.float32),
        grid=(B, S // tq),
        in_specs=[
            pl.BlockSpec((1, H, tq, dh), lambda b, qi: (b, 0, qi, 0)),
            _const_spec((H, dh, D)),
            _const_spec((1, D)),
            pl.BlockSpec((1, tq, D), lambda b, qi: (b, qi, 0)),
            _const_spec((1, D)),
            _const_spec((1, D)),
        ],
        out_specs=pl.BlockSpec((1, tq, D), lambda b, qi: (b, qi, 0)),
        compiler_params=_cparams("parallel", "parallel"),
    )(a, wo, bo, residual, g, beta)


def ffn_add_layernorm(x, w1, b1, w2, b2, g, beta, eps=_LN_EPS):
    B, S, D = x.shape
    F = w1.shape[1]
    x2 = x.reshape(-1, D)
    M = x2.shape[0]
    bm = _pick_row_block(M)
    out = pl.pallas_call(
        functools.partial(_ffn_add_ln_kernel, eps=eps),
        out_shape=jax.ShapeDtypeStruct((M, D), jnp.float32),
        grid=(M // bm,),
        in_specs=[
            pl.BlockSpec((bm, D), lambda i: (i, 0)),
            _const_spec((D, F)),
            _const_spec((1, F)),
            _const_spec((F, D)),
            _const_spec((1, D)),
            _const_spec((1, D)),
            _const_spec((1, D)),
        ],
        out_specs=pl.BlockSpec((bm, D), lambda i: (i, 0)),
        compiler_params=_cparams("parallel"),
    )(x2, w1, b1, w2, b2, g, beta)
    return out.reshape(B, S, D)


def generator_log_softmax(x, w, b):
    """Vocab-tiled linear + log_softmax (two passes, bounded VMEM)."""
    shape = x.shape
    D = shape[-1]
    V = w.shape[1]
    x2 = x.reshape(-1, D)
    M = x2.shape[0]
    bm = _pick_row_block(M)
    bv = _pick_col_block(V)

    logits, lse = pl.pallas_call(
        _gen_logits_lse_kernel,
        out_shape=(jax.ShapeDtypeStruct((M, V), jnp.float32),
                   jax.ShapeDtypeStruct((M, 1), jnp.float32)),
        grid=(M // bm, V // bv),
        in_specs=[
            pl.BlockSpec((bm, D), lambda i, j: (i, 0)),
            pl.BlockSpec((D, bv), lambda i, j: (0, j)),
            pl.BlockSpec((1, bv), lambda i, j: (0, j)),
        ],
        out_specs=(pl.BlockSpec((bm, bv), lambda i, j: (i, j)),
                   pl.BlockSpec((bm, 1), lambda i, j: (i, 0))),
        scratch_shapes=[pltpu.VMEM((bm, 1), jnp.float32),
                        pltpu.VMEM((bm, 1), jnp.float32)],
        compiler_params=_cparams("parallel", "arbitrary"),
    )(x2, w, b)

    out = pl.pallas_call(
        _logsoftmax_finalize_kernel,
        out_shape=jax.ShapeDtypeStruct((M, V), jnp.float32),
        grid=(M // bm, V // bv),
        in_specs=[
            pl.BlockSpec((bm, bv), lambda i, j: (i, j)),
            pl.BlockSpec((bm, 1), lambda i, j: (i, 0)),
        ],
        out_specs=pl.BlockSpec((bm, bv), lambda i, j: (i, j)),
        compiler_params=_cparams("parallel", "parallel"),
    )(logits, lse)
    return out.reshape(shape[:-1] + (V,))


# ----------------------------- model pieces ---------------------------------


def sinusoidal_pe(max_seq_len, embed_dim):
    pos = jnp.arange(max_seq_len, dtype=jnp.float32)[:, None]
    i = jnp.arange(0, embed_dim, 2, dtype=jnp.float32)[None, :]
    angle = pos / jnp.power(10000.0, i / embed_dim)
    pe = jnp.zeros((max_seq_len, embed_dim), jnp.float32)
    pe = pe.at[:, 0::2].set(jnp.sin(angle))
    pe = pe.at[:, 1::2].set(jnp.cos(angle))
    return pe


def embed(params, ids):
    # TODO(synk): token-embedding gather stays in plain JAX (no clean Pallas
    # equivalent worth it at this size).
    D = params["te"].shape[1]
    x = jnp.take(params["te"], ids, axis=0) * math.sqrt(D)   # TokenEmbedding
    x = x + params["pe"][: ids.shape[1]][None, :, :]          # PositionalEncoding
    return x


def encoder_layer(x, p, num_heads):
    H = num_heads
    qkv = headwise_projection(x, p["w_qkv"], p["b_qkv"])       # (B, 3H, S, dh)
    # reference forward calls encode(src) without a mask -> no-mask variant
    a = attention(qkv, qkv, qkv, num_heads=H, k_base=H, v_base=2 * H,
                  causal=False)
    x = merge_proj_add_layernorm(a, p["wo"], p["bo"], x, p["ln1_g"], p["ln1_b"])
    x = ffn_add_layernorm(x, p["w1"], p["b1"], p["w2"], p["b2"],
                          p["ln2_g"], p["ln2_b"])
    return x


def decoder_layer(x, enc, p, q_valid, kv_valid_self, kv_valid_cross, num_heads):
    H = num_heads
    # masked (pad + causal) self-attention
    # TODO(synk): QKV projection could be fused into the attention kernel
    # (weight-resident, K/V recompute per Sq tile) to kill the remaining
    # head-major activation HBM round trip.
    qkv = headwise_projection(x, p["sa_w_qkv"], p["sa_b_qkv"])
    a = attention(qkv, qkv, qkv, num_heads=H, k_base=H, v_base=2 * H,
                  causal=True, q_valid=q_valid, kv_valid=kv_valid_self)
    x = merge_proj_add_layernorm(a, p["sa_wo"], p["sa_bo"], x,
                                 p["ln1_g"], p["ln1_b"])
    # cross-attention (pad mask only)
    qh = headwise_projection(x, p["ca_wq"], p["ca_bq"])        # (B, H, Lt, dh)
    kv = headwise_projection(enc, p["ca_w_kv"], p["ca_b_kv"])  # (B, 2H, Ls, dh)
    c = attention(qh, kv, kv, num_heads=H, k_base=0, v_base=H,
                  causal=False, q_valid=q_valid, kv_valid=kv_valid_cross)
    x = merge_proj_add_layernorm(c, p["ca_wo"], p["ca_bo"], x,
                                 p["ln2_g"], p["ln2_b"])
    # FFN
    x = ffn_add_layernorm(x, p["w1"], p["b1"], p["w2"], p["b2"],
                          p["ln3_g"], p["ln3_b"])
    return x


def transformer_forward(params, src, tgt, num_heads):
    # ---- encode (reference calls encode(src) with no mask, not causal) ----
    x = embed(params, src)
    for lp in params["enc_layers"]:
        x = encoder_layer(x, lp, num_heads)
    encoder_out = x

    # ---- decode (pad+causal self-attn mask, pad cross-attn mask) ----
    # Masks are tiny per-token validity vectors; the (Sq, Sk) additive mask is
    # built in-kernel (no B*S^2 mask DMA).
    tgt_valid = (tgt != 0).astype(jnp.float32)
    src_valid = (src != 0).astype(jnp.float32)
    q_valid_t = tgt_valid[:, :, None]      # (B, Lt, 1)
    kv_valid_t = tgt_valid[:, None, :]     # (B, 1, Lt)
    kv_valid_s = src_valid[:, None, :]     # (B, 1, Ls)

    y = embed(params, tgt)
    for lp in params["dec_layers"]:
        y = decoder_layer(y, encoder_out, lp, q_valid_t, kv_valid_t,
                          kv_valid_s, num_heads)
    decoder_out = y

    # TODO(synk): the reference applies self.generator to the raw int `tgt`
    # tensor (a dtype/shape bug in the PyTorch module); generator is applied to
    # decoder_out here (standard Transformer semantics), fused with log_softmax.
    out = generator_log_softmax(decoder_out, params["gen_w"], params["gen_b"])
    return out, decoder_out


# ----------------------------- parameter init -------------------------------


def init_params(key, *, embed_dim, num_heads, num_layer, vocab_size,
                max_seq_len, ffn_dim):
    keys = list(jax.random.split(key, 8 + num_layer * 32))
    k_iter = iter(keys)

    D, F, H = embed_dim, ffn_dim, num_heads
    dh = D // H

    def w(shape):
        # matmul weights stored bf16 in HBM (halves weight DMA + VMEM residency)
        return (0.02 * jax.random.normal(next(k_iter), shape, jnp.float32)
                ).astype(_MXU_DTYPE)

    def zeros(shape):
        return jnp.zeros(shape, jnp.float32)

    def ones(shape):
        return jnp.ones(shape, jnp.float32)

    def enc_layer():
        return dict(
            # head-major fused QKV: (3H, D, dh) — columns of the (D, 3D) weight
            w_qkv=w((3 * H, D, dh)), b_qkv=zeros((3 * H, 1, dh)),
            wo=w((H, dh, D)), bo=zeros((1, D)),
            ln1_g=ones((1, D)), ln1_b=zeros((1, D)),
            w1=w((D, F)), b1=zeros((1, F)),
            w2=w((F, D)), b2=zeros((1, D)),
            ln2_g=ones((1, D)), ln2_b=zeros((1, D)),
        )

    def dec_layer():
        return dict(
            sa_w_qkv=w((3 * H, D, dh)), sa_b_qkv=zeros((3 * H, 1, dh)),
            sa_wo=w((H, dh, D)), sa_bo=zeros((1, D)),
            ca_wq=w((H, D, dh)), ca_bq=zeros((H, 1, dh)),
            ca_w_kv=w((2 * H, D, dh)), ca_b_kv=zeros((2 * H, 1, dh)),
            ca_wo=w((H, dh, D)), ca_bo=zeros((1, D)),
            ln1_g=ones((1, D)), ln1_b=zeros((1, D)),
            ln2_g=ones((1, D)), ln2_b=zeros((1, D)),
            w1=w((D, F)), b1=zeros((1, F)),
            w2=w((F, D)), b2=zeros((1, D)),
            ln3_g=ones((1, D)), ln3_b=zeros((1, D)),
        )

    return dict(
        te=0.02 * jax.random.normal(next(k_iter), (vocab_size, D), jnp.float32),
        pe=sinusoidal_pe(max_seq_len, D),
        enc_layers=[enc_layer() for _ in range(num_layer)],
        dec_layers=[dec_layer() for _ in range(num_layer)],
        gen_w=w((D, vocab_size)),
        gen_b=zeros((1, vocab_size)),
    )


# ----------------------------------- main ------------------------------------

if __name__ == "__main__":
    # small shapes consistent with the module
    B = 2
    SEQ = 8
    EMBED_DIM = 32
    NUM_HEADS = 4
    NUM_LAYER = 2
    VOCAB = 64
    MAX_SEQ = 16

    key = jax.random.PRNGKey(0)
    kp, ks, kt = jax.random.split(key, 3)

    params = init_params(kp, embed_dim=EMBED_DIM, num_heads=NUM_HEADS,
                         num_layer=NUM_LAYER, vocab_size=VOCAB,
                         max_seq_len=MAX_SEQ, ffn_dim=4 * EMBED_DIM)

    src = jax.random.randint(ks, (B, SEQ), 1, VOCAB, dtype=jnp.int32)
    tgt = jax.random.randint(kt, (B, SEQ), 1, VOCAB, dtype=jnp.int32)
    # introduce some padding (pad_idx = 0) to exercise the pad masks
    src = src.at[:, -2:].set(0)
    tgt = tgt.at[:, -1:].set(0)

    out, decoder_out = transformer_forward(params, src, tgt, NUM_HEADS)
    jax.block_until_ready((out, decoder_out))

    assert out.shape == (B, SEQ, VOCAB)
    assert decoder_out.shape == (B, SEQ, EMBED_DIM)
    assert bool(jnp.all(jnp.isfinite(out)))
    assert bool(jnp.all(jnp.isfinite(decoder_out)))
    # log_softmax rows should sum to ~1 in prob space
    assert bool(jnp.allclose(jnp.sum(jnp.exp(out), axis=-1), 1.0, atol=1e-3))

    print("KERNEL_OK")
</pallas_src>

<mosaic_0001>
module attributes {stable_mosaic.version = 11 : i64} {
  func.func @_headwise_proj_kernel(%arg0: i32, %arg1: i32, %arg2: memref<1x8x32xf32, #tpu.memory_space<vmem>>, %arg3: memref<1x32x8xbf16, #tpu.memory_space<vmem>>, %arg4: memref<1x1x8xf32, #tpu.memory_space<vmem>>, %arg5: memref<1x1x8x8xbf16, #tpu.memory_space<vmem>>) attributes {dimension_semantics = [#tpu.dimension_semantics<parallel>, #tpu.dimension_semantics<parallel>], iteration_bounds = array<i64: 2, 12>, scalar_prefetch = 0 : i64, scratch_operands = 0 : i64, tpu.core_type = #tpu.core_type<tc>, window_params = [{transform_indices = @transform_0, window_bounds = array<i64: 1, 8, 32>}, {transform_indices = @transform_1, window_bounds = array<i64: 1, 32, 8>}, {transform_indices = @transform_2, window_bounds = array<i64: 1, 1, 8>}, {transform_indices = @transform_3, window_bounds = array<i64: 1, 1, 8, 8>}]} {
    %c0 = arith.constant 0 : index
    %c0_0 = arith.constant 0 : index
    %c0_1 = arith.constant 0 : index
    %0 = vector.load %arg2[%c0, %c0_0, %c0_1] : memref<1x8x32xf32, #tpu.memory_space<vmem>>, vector<1x8x32xf32>
    %1 = vector.shape_cast %0 : vector<1x8x32xf32> to vector<8x32xf32>
    %2 = arith.truncf %1 : vector<8x32xf32> to vector<8x32xbf16>
    %c0_2 = arith.constant 0 : index
    %c0_3 = arith.constant 0 : index
    %c0_4 = arith.constant 0 : index
    %3 = vector.load %arg3[%c0_2, %c0_3, %c0_4] : memref<1x32x8xbf16, #tpu.memory_space<vmem>>, vector<1x32x8xbf16>
    %4 = vector.shape_cast %3 : vector<1x32x8xbf16> to vector<32x8xbf16>
    %cst = arith.constant dense<0.000000e+00> : vector<8x8xf32>
    %5 = tpu.matmul %2, %4, %cst {dimension_numbers = #tpu.dot_dimension_numbers<[1], [0], [0], [1], [0, 0, 1, 1], [], []>} : vector<8x32xbf16>, vector<32x8xbf16>, vector<8x8xf32> -> vector<8x8xf32>
    %c0_5 = arith.constant 0 : index
    %c0_6 = arith.constant 0 : index
    %c0_7 = arith.constant 0 : index
    %6 = vector.load %arg4[%c0_5, %c0_6, %c0_7] : memref<1x1x8xf32, #tpu.memory_space<vmem>>, vector<1x1x8xf32>
    %7 = vector.shape_cast %6 : vector<1x1x8xf32> to vector<1x8xf32>
    %8 = vector.broadcast %7 : vector<1x8xf32> to vector<8x8xf32>
    %9 = arith.addf %5, %8 : vector<8x8xf32>
    %10 = arith.truncf %9 : vector<8x8xf32> to vector<8x8xbf16>
    %c0_8 = arith.constant 0 : index
    %c0_9 = arith.constant 0 : index
    %c0_10 = arith.constant 0 : index
    %c0_11 = arith.constant 0 : index
    %11 = vector.load %arg5[%c0_8, %c0_9, %c0_10, %c0_11] : memref<1x1x8x8xbf16, #tpu.memory_space<vmem>>, vector<1x1x8x8xbf16>
    %12 = vector.shape_cast %11 : vector<1x1x8x8xbf16> to vector<8x8xbf16>
    %13 = vector.shape_cast %10 : vector<8x8xbf16> to vector<1x1x8x8xbf16>
    tpu.vector_store %arg5[%c0_8, %c0_9, %c0_10, %c0_11], %13 {strides = array<i32>} : memref<1x1x8x8xbf16, #tpu.memory_space<vmem>>, vector<1x1x8x8xbf16>,
    return
  }
  func.func @transform_0(%arg0: i32, %arg1: i32) -> (i32, i32, i32) {
    %c0_i32 = arith.constant 0 : i32
    %c0_i32_0 = arith.constant 0 : i32
    %c0_i32_1 = arith.constant 0 : i32
    return %arg0, %c0_i32, %c0_i32_0 : i32, i32, i32
  }
  func.func @transform_1(%arg0: i32, %arg1: i32) -> (i32, i32, i32) {
    %c0_i32 = arith.constant 0 : i32
    %c0_i32_0 = arith.constant 0 : i32
    %c0_i32_1 = arith.constant 0 : i32
    return %arg1, %c0_i32, %c0_i32_0 : i32, i32, i32
  }
  func.func @transform_2(%arg0: i32, %arg1: i32) -> (i32, i32, i32) {
    %c0_i32 = arith.constant 0 : i32
    %c0_i32_0 = arith.constant 0 : i32
    %c0_i32_1 = arith.constant 0 : i32
    return %arg1, %c0_i32, %c0_i32_0 : i32, i32, i32
  }
  func.func @transform_3(%arg0: i32, %arg1: i32) -> (i32, i32, i32, i32) {
    %c0_i32 = arith.constant 0 : i32
    %c0_i32_0 = arith.constant 0 : i32
    %c0_i32_1 = arith.constant 0 : i32
    return %arg0, %arg1, %c0_i32, %c0_i32_0 : i32, i32, i32, i32
  }
}

</mosaic_0001>

<llo_original>
// kernel: tpu_custom_call.1
$region0: #{tpu_custom_call.1}
  #allocation0 [shape = 'u32[]', space=smem, size = 0x4, offset = 0x4, fixed_abs, tag = 'smem constant byte address 0x4 - core index']
  #allocation1 [shape = 'u32[144,128]{1,0:T(1,128)}', space=vmem, size = 0x12000, scoped, tag = 'internal scratch']
  %s0 = inlined_call_operand.vmem [shape: f32[2,8,32], index: 0, kind: input, shape index: {}]
  %s1 = inlined_call_operand.vmem [shape: bf16[12,32,8], index: 1, kind: input, shape index: {}]
  %s2 = inlined_call_operand.vmem [shape: f32[12,1,8], index: 2, kind: input, shape index: {}]
  %s3 = inlined_call_operand.vmem [shape: bf16[2,12,8,8], index: 3, kind: output, shape index: {}]
  %s4 = sld [smem:[#allocation0]]
  $region45: #{tpu_custom_call.1} parent=0
    _
  %s6 = ssub.s32 1, %s4
  %s7 = scalar_select 0, %s6, %s4
  loop: start=0, step=1, limit=26
  $region2: #{tpu_custom_call.1} parent=0 // loop_pre_header
    _
  $region3: #{tpu_custom_call.1} parent=0 // loop_header
    %s9 = sphi 0, %s13
    %p10 = scmp.ge.s32.totalorder %s9, 26
    %s16 = sphi 0, %s28
    %s17 = sphi 0, %s24
    %s18 = sphi 0, %s16
    %s19 = sphi 0, %s17
    %s20 = sphi 0, %s18
    %s21 = sphi 0, %s19
    %s31 = sphi 0, %s33
    %s34 = sphi 0, %s31
    %s35 = sphi 0, %s34
    %s51 = sphi 0, %s35
    %s57 = sphi 0, %s59
    %s60 = sphi 0, %s57
    %s61 = sphi 0, %s60
    %s77 = sphi 0, %s61
    %s83 = sphi 0, %s85
    %s86 = sphi 0, %s83
    %s87 = sphi 0, %s86
    %s103 = sphi 0, %s87
    %s111 = sphi 0, %s113
    %s114 = sphi 0, %s111
    %s115 = sphi 0, %s114
    %s131 = sphi 0, %s115
  $region4: #{tpu_custom_call.1} parent=0 // loop_header_branch
    %12 = sbr.rel (%p10) target = $region8
  $region5: #{tpu_custom_call.1} parent=0 // loop_body
    %s14 = ssub.s32 %s9, 1
    %s15 = ssub.s32 %s9, 2
    %s22 = sadd.s32 1, %s17
    %p23 = scmp.ge.s32.totalorder %s22, 12
    %s24 = scalar_select %p23, 0, %s22
    %s25 = sadd.s32 1, %s16
    %s26 = scalar_select %p23, %s25, %s16
    %p27 = scmp.ge.s32.totalorder %s26, 2
    %s28 = scalar_select %p27, 0, %s26
    %s29 = ssub.s32 %s16, %s28
    %p30 = scmp.eq.s32.totalorder %s29, 0
    %s32 = sadd.s32 %s31, 1
    %s33 = scalar_select %p30, %s31, %s32
    %p36 = pneg %p30
    %p37 = scmp.eq.s32.totalorder %s9, 23
    %p38 = por %p36, %p37
    %p39 = scmp.ne.s32.totalorder %s31, %s34
    %p40 = scmp.eq.s32.totalorder %s9, 0
    %p41 = por %p39, %p40
    %p42 = scmp.ne.s32.totalorder %s31, %s34
    %p43 = scmp.eq.s32.totalorder %s14, 23
    %p44 = por %p42, %p43
    %p45 = scmp.ne.s32.totalorder %s34, %s35
    %p46 = scmp.eq.s32.totalorder %s14, 0
    %p47 = por %p45, %p46
    %p48 = scmp.ne.s32.totalorder %s34, %s35
    %p49 = scmp.eq.s32.totalorder %s15, 23
    %p50 = por %p48, %p49
    %p52 = scmp.ne.s32.totalorder %s35, %s51
    %p53 = scmp.eq.s32.totalorder %s15, 0
    %p54 = por %p52, %p53
    %s55 = ssub.s32 %s17, %s24
    %p56 = scmp.eq.s32.totalorder %s55, 0
    %s58 = sadd.s32 %s57, 1
    %s59 = scalar_select %p56, %s57, %s58
    %p62 = pneg %p56
    %p63 = scmp.eq.s32.totalorder %s9, 23
    %p64 = por %p62, %p63
    %p65 = scmp.ne.s32.totalorder %s57, %s60
    %p66 = scmp.eq.s32.totalorder %s9, 0
    %p67 = por %p65, %p66
    %p68 = scmp.ne.s32.totalorder %s57, %s60
    %p69 = scmp.eq.s32.totalorder %s14, 23
    %p70 = por %p68, %p69
    %p71 = scmp.ne.s32.totalorder %s60, %s61
    %p72 = scmp.eq.s32.totalorder %s14, 0
    %p73 = por %p71, %p72
    %p74 = scmp.ne.s32.totalorder %s60, %s61
    %p75 = scmp.eq.s32.totalorder %s15, 23
    %p76 = por %p74, %p75
    %p78 = scmp.ne.s32.totalorder %s61, %s77
    %p79 = scmp.eq.s32.totalorder %s15, 0
    %p80 = por %p78, %p79
    %s81 = ssub.s32 %s17, %s24
    %p82 = scmp.eq.s32.totalorder %s81, 0
    %s84 = sadd.s32 %s83, 1
    %s85 = scalar_select %p82, %s83, %s84
    %p88 = pneg %p82
    %p89 = scmp.eq.s32.totalorder %s9, 23
    %p90 = por %p88, %p89
    %p91 = scmp.ne.s32.totalorder %s83, %s86
    %p92 = scmp.eq.s32.totalorder %s9, 0
    %p93 = por %p91, %p92
    %p94 = scmp.ne.s32.totalorder %s83, %s86
    %p95 = scmp.eq.s32.totalorder %s14, 23
    %p96 = por %p94, %p95
    %p97 = scmp.ne.s32.totalorder %s86, %s87
    %p98 = scmp.eq.s32.totalorder %s14, 0
    %p99 = por %p97, %p98
    %p100 = scmp.ne.s32.totalorder %s86, %s87
    %p101 = scmp.eq.s32.totalorder %s15, 23
    %p102 = por %p100, %p101
    %p104 = scmp.ne.s32.totalorder %s87, %s103
    %p105 = scmp.eq.s32.totalorder %s15, 0
    %p106 = por %p104, %p105
    %s107 = ssub.s32 %s16, %s28
    %s108 = ssub.s32 %s17, %s24
    %s109 = sor.u32 %s107, %s108
    %p110 = scmp.eq.s32.totalorder %s109, 0
    %s112 = sadd.s32 %s111, 1
    %s113 = scalar_select %p110, %s111, %s112
    %p116 = pneg %p110
    %p117 = scmp.eq.s32.totalorder %s9, 23
    %p118 = por %p116, %p117
    %p119 = scmp.ne.s32.totalorder %s111, %s114
    %p120 = scmp.eq.s32.totalorder %s9, 0
    %p121 = por %p119, %p120
    %p122 = scmp.ne.s32.totalorder %s111, %s114
    %p123 = scmp.eq.s32.totalorder %s14, 23
    %p124 = por %p122, %p123
    %p125 = scmp.ne.s32.totalorder %s114, %s115
    %p126 = scmp.eq.s32.totalorder %s14, 0
    %p127 = por %p125, %p126
    %p128 = scmp.ne.s32.totalorder %s114, %s115
    %p129 = scmp.eq.s32.totalorder %s15, 23
    %p130 = por %p128, %p129
    %p132 = scmp.ne.s32.totalorder %s115, %s131
    %p133 = scmp.eq.s32.totalorder %s15, 0
    %p134 = por %p132, %p133
    %p135 = scmp.le.s32.totalorder 1, %s9
    %p136 = scmp.lt.s32.totalorder %s9, 25
    %p137 = pnand %p135, %p136
    %p138 = pneg %p137
    // Predicated region
    $region9: #{tpu_custom_call.1} parent=5 // pred_check
      _
    $region10: #{tpu_custom_call.1} parent=5 // pred_check_branch
      %140 = sbr.rel (%p137) target = $region12
    $region11: #{tpu_custom_call.1} parent=5 // pred_region
      %s141 = ssub.s32 %s9, 1
    $region12: #{tpu_custom_call.1} parent=5 // pred_fallthru
      _
    %p142 = scmp.lt.s32.totalorder %s9, 24
    // Predicated region
    $region13: #{tpu_custom_call.1} parent=5 // pred_check
      %p143 = pneg %p142
    $region14: #{tpu_custom_call.1} parent=5 // pred_check_branch
      %145 = sbr.rel (%p143) target = $region16
    $region15: #{tpu_custom_call.1} parent=5 // pred_region
      // Predicated region
      $region17: #{tpu_custom_call.1} parent=15 // pred_check
        %p146 = pneg %p41
      $region18: #{tpu_custom_call.1} parent=15 // pred_check_branch
        %148 = sbr.rel (%p146) target = $region20
      $region19: #{tpu_custom_call.1} parent=15 // pred_region
        %p149 = scmp.lt.s32.totalorder %s16, 1
        %s150 = scalar_select %p149, %s16, 1
        %s151 = smul.addr %s150, 8
        %s152 = scalar_lea.vmem %s0, %s151
      $region20: #{tpu_custom_call.1} parent=15 // pred_fallthru
        _
      // Predicated region
      $region21: #{tpu_custom_call.1} parent=15 // pred_check
        %p153 = pneg %p67
      $region22: #{tpu_custom_call.1} parent=15 // pred_check_branch
        %155 = sbr.rel (%p153) target = $region24
      $region23: #{tpu_custom_call.1} parent=15 // pred_region
        %p156 = scmp.lt.s32.totalorder %s17, 11
        %s157 = scalar_select %p156, %s17, 11
        %s158 = smul.addr %s157, 4
        %s159 = smul.addr %s158, 4
        %s160 = scalar_lea.vmem %s1, %s159
      $region24: #{tpu_custom_call.1} parent=15 // pred_fallthru
        _
      // Predicated region
      $region25: #{tpu_custom_call.1} parent=15 // pred_check
        %p161 = pneg %p93
      $region26: #{tpu_custom_call.1} parent=15 // pred_check_branch
        %163 = sbr.rel (%p161) target = $region28
      $region27: #{tpu_custom_call.1} parent=15 // pred_region
        %p164 = scmp.lt.s32.totalorder %s17, 11
        %s165 = scalar_select %p164, %s17, 11
        %s166 = scalar_lea.vmem %s2, %s165
      $region28: #{tpu_custom_call.1} parent=15 // pred_fallthru
        _
    $region16: #{tpu_custom_call.1} parent=5 // pred_fallthru
      _
    %p167 = scmp.le.s32.totalorder 1, %s9
    %p168 = scmp.lt.s32.totalorder %s9, 25
    %p169 = pnand %p167, %p168
    %p170 = pneg %p169
    // Predicated region
    $region29: #{tpu_custom_call.1} parent=5 // pred_check
      _
    $region30: #{tpu_custom_call.1} parent=5 // pred_check_branch
      %172 = sbr.rel (%p169) target = $region32
    $region31: #{tpu_custom_call.1} parent=5 // pred_region
      %s173 = ssub.s32 %s9, 1
      %p174 = scmp.lt.s32.totalorder %s18, 1
      %s175 = scalar_select %p174, %s18, 1
      %s176 = smul.addr %s175, 8
      %s177 = scalar_lea.vmem %s0, %s176
      %p178 = pneg %p47
      %p179 = pneg %p44
      %p180 = scmp.lt.s32.totalorder %s19, 11
      %s181 = scalar_select %p180, %s19, 11
      %s182 = smul.addr %s181, 4
      %s183 = smul.addr %s182, 4
      %s184 = scalar_lea.vmem %s1, %s183
      %p185 = pneg %p73
      %p186 = pneg %p70
      %p187 = scmp.lt.s32.totalorder %s19, 11
      %s188 = scalar_select %p187, %s19, 11
      %s189 = scalar_lea.vmem %s2, %s188
      %p190 = pneg %p99
      %p191 = pneg %p96
      %p192 = pneg %p127
      %p193 = pneg %p124
      %p194 = scmp.lt.s32.totalorder %s18, 1
      %s195 = scalar_select %p194, %s18, 1
      %p196 = scmp.lt.s32.totalorder %s19, 11
      %s197 = scalar_select %p196, %s19, 11
      %s198 = smul.addr %s195, 12
      %s199 = sadd.s32 %s197, %s198
      %s200 = smul.addr %s199, 4
      %s201 = scalar_lea.vmem %s3, %s200
      %p202 = scmp.lt.s32.totalorder %s18, 1
      %s203 = scalar_select %p202, %s18, 1
      %s204 = smul.addr %s203, 8
      %s205 = scalar_lea.vmem %s0, %s204
      %p206 = scmp.lt.s32.totalorder %s19, 11
      %s207 = scalar_select %p206, %s19, 11
      %s208 = smul.addr %s207, 4
      %s209 = smul.addr %s208, 4
      %s210 = scalar_lea.vmem %s1, %s209
      %p211 = scmp.lt.s32.totalorder %s19, 11
      %s212 = scalar_select %p211, %s19, 11
      %s213 = scalar_lea.vmem %s2, %s212
      %p214 = scmp.lt.s32.totalorder %s18, 1
      %s215 = scalar_select %p214, %s18, 1
      %p216 = scmp.lt.s32.totalorder %s19, 11
      %s217 = scalar_select %p216, %s19, 11
      %s218 = smul.addr %s215, 12
      %s219 = sadd.s32 %s217, %s218
      %s220 = smul.addr %s219, 4
      %s221 = scalar_lea.vmem %s3, %s220
      %v223 = vld [vmem:[%s205] sm:$0xff]
      %v224 = vpack.c.bf16 %v223, %v223
      %v225 = vld [vmem:[%s210] sm:$0xf]
      %v226 = vld [vmem:[%s210 + $0x4] sm:$0xf]
      %v227 = vld [vmem:[%s210 + $0x8] sm:$0xf]
      %v228 = vld [vmem:[%s210 + $0xc] sm:$0xf]
      %v229 = vld [vmem:[%s213] sm:$0x1]
      %v231 = vlaneseq
      %v232 = vshrl.u32 %v231, 7
      %v233 = vsub.s32 0, %v232
      %v234 = vrot.slane %v229, %v233
      %v240 = vunpack.c.l.b16 %v225
      %v241 = vunpack.c.l.b16 %v226
      %v242 = vunpack.c.l.b16 %v227
      %v243 = vunpack.c.l.b16 %v228
      %v244 = vpack.c.b16 %v241, %v240
      %v245 = vpack.c.b16 %v243, %v242
      %vm248 = vcmask 261120
      %v250 = vsel %vm248, %v224, 0
      %252 = vmatprep.subr.bf16.mxu0 0
      %253 = vmatpush1.bf16.msra.mxu0 %v244
      %254 = vmatprep.subr.bf16.mxu0 0
      %255 = vmatpush1.bf16.msra.mxu0 %v245
      %256 = vmatprep.subr.bf16.mxu0 0
      %257 = vmatpush1.bf16.msra.mxu0 0
      %258 = vmatprep.subr.bf16.mxu0 0
      %259 = vmatpush1.bf16.msra.mxu0 0
      %260 = vmatprep.subr.bf16.mxu0 0
      %261 = vmatpush1.bf16.msra.mxu0 0
      %262 = vmatprep.subr.bf16.mxu0 0
      %263 = vmatpush1.bf16.msra.mxu0 0
      %264 = vmatprep.subr.bf16.mxu0 0
      %265 = vmatpush1.bf16.msra.mxu0 0
      %266 = vmatprep.subr.bf16.mxu0 0
      %267 = vmatpush1.bf16.msra.mxu0 0
      %268 = vmatprep.subr.bf16.mxu0 0
      %269 = vmatpush1.bf16.msra.mxu0 0
      %270 = vmatprep.subr.bf16.mxu0 0
      %271 = vmatpush1.bf16.msra.mxu0 0
      %272 = vmatprep.subr.bf16.mxu0 0
      %273 = vmatpush1.bf16.msra.mxu0 0
      %274 = vmatprep.subr.bf16.mxu0 0
      %275 = vmatpush1.bf16.msra.mxu0 0
      %276 = vmatprep.subr.bf16.mxu0 0
      %277 = vmatpush1.bf16.msra.mxu0 0
      %278 = vmatprep.subr.bf16.mxu0 0
      %279 = vmatpush1.bf16.msra.mxu0 0
      %280 = vmatprep.subr.bf16.mxu0 0
      %281 = vmatpush1.bf16.msra.mxu0 0
      %282 = vmatprep.subr.bf16.mxu0 0
      %283 = vmatpush1.bf16.msra.mxu0 0
      %284 = vmatprep.mubr.bf16.mxu0 0
      %285 = vmatmul.mubr.bf16.gmra.mrb[0].mxu0 %v250
      %v286 = vpop.f32.mrb[0].mxu0
      %v287 = vadd.f32 %v234, %v286
      %v288 = vpop.f32.mrb[0].mxu0
      %v289 = vpop.f32.mrb[0].mxu0
      %v290 = vpop.f32.mrb[0].mxu0
      %291 = vdwg.mxu0
      %v292 = vpack.c.bf16 %v287, %v287
      %vm293 = vcmask 60416
      %294 = vst.msk [vmem:[%s221] sm:$0xf] %vm293, %v292
      %p295 = scmp.lt.s32.totalorder %s18, 1
      %s296 = scalar_select %p295, %s18, 1
      %p297 = scmp.lt.s32.totalorder %s19, 11
      %s298 = scalar_select %p297, %s19, 11
      %s299 = smul.addr %s296, 12
      %s300 = sadd.s32 %s298, %s299
      %s301 = smul.addr %s300, 4
      %s302 = scalar_lea.vmem %s3, %s301
      // Predicated region
      $region33: #{tpu_custom_call.1} parent=31 // pred_check
        %p303 = pneg %p124
      $region34: #{tpu_custom_call.1} parent=31 // pred_check_branch
        %305 = sbr.rel (%p303) target = $region36
      $region35: #{tpu_custom_call.1} parent=31 // pred_region
        _
      $region36: #{tpu_custom_call.1} parent=31 // pred_fallthru
        _
    $region32: #{tpu_custom_call.1} parent=5 // pred_fallthru
      _
    %p306 = scmp.le.s32.totalorder 2, %s9
    // Predicated region
    $region37: #{tpu_custom_call.1} parent=5 // pred_check
      %p307 = pneg %p306
    $region38: #{tpu_custom_call.1} parent=5 // pred_check_branch
      %309 = sbr.rel (%p307) target = $region40
    $region39: #{tpu_custom_call.1} parent=5 // pred_region
      %s310 = ssub.s32 %s9, 2
      // Predicated region
      $region41: #{tpu_custom_call.1} parent=39 // pred_check
        %p311 = pneg %p130
      $region42: #{tpu_custom_call.1} parent=39 // pred_check_branch
        %313 = sbr.rel (%p311) target = $region44
      $region43: #{tpu_custom_call.1} parent=39 // pred_region
        %p314 = scmp.lt.s32.totalorder %s20, 1
        %s315 = scalar_select %p314, %s20, 1
        %p316 = scmp.lt.s32.totalorder %s21, 11
        %s317 = scalar_select %p316, %s21, 11
        %s318 = smul.addr %s315, 12
        %s319 = sadd.s32 %s317, %s318
        %s320 = smul.addr %s319, 4
        %s321 = scalar_lea.vmem %s3, %s320
      $region44: #{tpu_custom_call.1} parent=39 // pred_fallthru
        _
    $region40: #{tpu_custom_call.1} parent=5 // pred_fallthru
      _
  $region6: #{tpu_custom_call.1} parent=0 // loop_footer
    %s13 = sadd.s32 1, %s9
  $region7: #{tpu_custom_call.1} parent=0 // loop_footer_branch
    %8 = sbr.rel target = $region3
  $region8: #{tpu_custom_call.1} parent=0 // loop_exit
    _

</llo_original>
